<compile_context>
chip_gen: v5e
topology: v5e:2x2
jax: 0.10.0
libtpu: 0.0.40
codegen_flags: <defaults>
</compile_context>

<pallas_src>
import jax
import jax.numpy as jnp
from jax.experimental import pallas as pl
from jax.experimental.pallas import tpu as pltpu


# ---------------------------------------------------------------------------
# Kernels
# ---------------------------------------------------------------------------

def _v_proj_kernel(x_ref, w_ref, o_ref):
    # x_ref: (TM, C) activation tile, w_ref: (C, C) weight in (in, out) layout.
    o_ref[...] = jnp.dot(
        x_ref[...], w_ref[...],
        preferred_element_type=jnp.float32).astype(o_ref.dtype)


def _v_proj_bias_kernel(x_ref, w_ref, b_ref, o_ref):
    y = jnp.dot(x_ref[...], w_ref[...], preferred_element_type=jnp.float32)
    y = y + b_ref[...].astype(jnp.float32)        # fused bias add (VPU, free under MXU)
    o_ref[...] = y.astype(o_ref.dtype)


# ---------------------------------------------------------------------------
# Tiling helpers
# ---------------------------------------------------------------------------

def _round_up(a, b):
    return (a + b - 1) // b * b


def _cdiv(a, b):
    return (a + b - 1) // b


_VMEM_TILE_BUDGET = 24 << 20  # bytes: double-buffered x/out tiles + resident weight


def _pick_tm(M, C, x_itemsize, o_itemsize, w_itemsize):
    """Largest 8-aligned M-tile that keeps all VMEM buffers under budget."""
    weight_bytes = 2 * C * C * w_itemsize                 # conservative (double-buffer)
    per_row = 2 * C * (x_itemsize + o_itemsize)           # double-buffered x + out
    tm = (_VMEM_TILE_BUDGET - weight_bytes) // per_row
    tm = max(8, min(1024, int(tm)))
    if M >= 8:
        tm = min(tm, (M // 8) * 8)                        # don't over-allocate tiny M
    else:
        tm = min(tm, _round_up(M, 8))
    tm = max(8, (tm // 8) * 8)
    # Keep >= 2 grid steps on non-trivial problems so both v7x TensorCores get work.
    if M > 256 and _cdiv(M, tm) < 2:
        tm = max(8, _round_up(_cdiv(M, 2), 8))
    return tm


# ---------------------------------------------------------------------------
# Wrapper
# ---------------------------------------------------------------------------

def v_attention_forward(x, weight, num_heads, bias=None):
    """Pallas implementation of VAttention.forward.

    Args:
      x:      (B, N, C)
      weight: (C, C) PyTorch nn.Linear weight layout (out_features, in_features)
      num_heads: H, must divide C.
      bias:   optional (C,) bias (qkv_bias=True); None -> bias-free kernel.
    Returns:
      (B, H, N, C // H)
    """
    B, N, C = x.shape
    H = num_heads
    D = C // H
    M = B * N

    x2 = x.reshape(M, C)
    # One-time (C, C) transpose to (in, out) layout: the in-kernel contraction
    # becomes the canonical MXU form, no per-step XLU relayout of the RHS.
    w_t = weight.T

    x_is = x2.dtype.itemsize
    o_is = x2.dtype.itemsize
    w_is = w_t.dtype.itemsize
    TM = _pick_tm(M, C, x_is, o_is, w_is)
    num_m = _cdiv(M, TM)

    vmem_needed = 2 * TM * C * (x_is + o_is) + 2 * C * C * w_is
    if bias is not None:
        vmem_needed += 2 * C * bias.dtype.itemsize
    # Raise the scoped-VMEM limit explicitly (v5e default is only 16 MiB) while
    # staying well under v7x's 64 MiB physical VMEM.
    vmem_limit = int(min(max(vmem_needed + (4 << 20), 16 << 20), 56 << 20))

    in_specs = [
        pl.BlockSpec((TM, C), lambda i: (i, 0)),   # activations: streamed once over M
        pl.BlockSpec((C, C), lambda i: (0, 0)),    # weight: VMEM-resident, never re-DMA'd
    ]
    args = [x2, w_t]
    if bias is not None:
        in_specs.append(pl.BlockSpec((1, C), lambda i: (0, 0)))
        args.append(bias.reshape(1, C))            # keep original dtype; cast in-kernel
        kernel = _v_proj_bias_kernel
    else:
        kernel = _v_proj_kernel

    v = pl.pallas_call(
        kernel,
        out_shape=jax.ShapeDtypeStruct((M, C), x.dtype),
        grid=(num_m,),                             # cdiv grid: Pallas masks the tail block
        in_specs=in_specs,
        out_specs=pl.BlockSpec((TM, C), lambda i: (i, 0)),
        compiler_params=pltpu.CompilerParams(
            dimension_semantics=("parallel",),
            vmem_limit_bytes=vmem_limit),
    )(*args)

    # reshape(B,N,1,H,D).permute(2,0,3,1,4)[0] == (B, H, N, D).
    # TODO(synk): downstream attention kernels should consume the lane-dense
    # (B, N, C) layout directly and slice heads with pl.ds(h*D, D); D < 128, so
    # materializing this transpose costs an extra HBM pass if XLA can't fuse it.
    return v.reshape(B, N, H, D).transpose(0, 2, 1, 3)


def v_attention_reference(x, weight, num_heads, bias=None):
    B, N, C = x.shape
    H = num_heads
    D = C // H
    v = jnp.einsum("bnc,oc->bno", x, weight)       # Linear: x @ W.T
    if bias is not None:
        v = v + bias
    return v.reshape(B, N, H, D).transpose(0, 2, 1, 3)


# ---------------------------------------------------------------------------
# Self-test
# ---------------------------------------------------------------------------

if __name__ == "__main__":
    key = jax.random.PRNGKey(0)
    kx, kw, kb, kx2 = jax.random.split(key, 4)

    # Case 1: module default (qkv_bias=False), tile-aligned M.
    B, N, C, H = 2, 16, 128, 8
    x = jax.random.normal(kx, (B, N, C), dtype=jnp.float32)
    bound = 1.0 / (C ** 0.5)
    weight = jax.random.uniform(kw, (C, C), dtype=jnp.float32,
                                minval=-bound, maxval=bound)

    out = jax.block_until_ready(v_attention_forward(x, weight, H))
    ref = v_attention_reference(x, weight, H)
    assert out.shape == (B, H, N, C // H), out.shape
    assert jnp.allclose(out, ref, atol=1e-4, rtol=1e-4), \
        float(jnp.max(jnp.abs(out - ref)))

    # Case 2: ragged sequence (M not tile-aligned, exercises masked tail block)
    # with qkv_bias=True (fused bias path).
    B2, N2 = 2, 13
    x_r = jax.random.normal(kx2, (B2, N2, C), dtype=jnp.float32)
    bias = jax.random.uniform(kb, (C,), dtype=jnp.float32,
                              minval=-bound, maxval=bound)
    out2 = jax.block_until_ready(v_attention_forward(x_r, weight, H, bias=bias))
    ref2 = v_attention_reference(x_r, weight, H, bias=bias)
    assert out2.shape == (B2, H, N2, C // H), out2.shape
    assert jnp.allclose(out2, ref2, atol=1e-4, rtol=1e-4), \
        float(jnp.max(jnp.abs(out2 - ref2)))

    print("KERNEL_OK")
</pallas_src>

<mosaic_0001>
module attributes {stable_mosaic.version = 11 : i64} {
  func.func @_v_proj_kernel(%arg0: i32, %arg1: memref<32x128xf32, #tpu.memory_space<vmem>>, %arg2: memref<128x128xf32, #tpu.memory_space<vmem>>, %arg3: memref<32x128xf32, #tpu.memory_space<vmem>>) attributes {dimension_semantics = [#tpu.dimension_semantics<parallel>], iteration_bounds = array<i64: 1>, scalar_prefetch = 0 : i64, scratch_operands = 0 : i64, tpu.core_type = #tpu.core_type<tc>, window_params = [{transform_indices = @transform_0, window_bounds = array<i64: 32, 128>}, {pipeline_mode = #tpu.pipeline_mode<synchronous>, transform_indices = @transform_1, window_bounds = array<i64: 128, 128>}, {transform_indices = @transform_2, window_bounds = array<i64: 32, 128>}]} {
    %c0 = arith.constant 0 : index
    %c0_0 = arith.constant 0 : index
    %0 = vector.load %arg1[%c0, %c0_0] : memref<32x128xf32, #tpu.memory_space<vmem>>, vector<32x128xf32>
    %c0_1 = arith.constant 0 : index
    %c0_2 = arith.constant 0 : index
    %1 = vector.load %arg2[%c0_1, %c0_2] : memref<128x128xf32, #tpu.memory_space<vmem>>, vector<128x128xf32>
    %cst = arith.constant dense<0.000000e+00> : vector<32x128xf32>
    %2 = tpu.matmul %0, %1, %cst {dimension_numbers = #tpu.dot_dimension_numbers<[1], [0], [0], [1], [0, 0, 1, 1], [], []>} : vector<32x128xf32>, vector<128x128xf32>, vector<32x128xf32> -> vector<32x128xf32>
    %c0_3 = arith.constant 0 : index
    %c0_4 = arith.constant 0 : index
    %3 = vector.load %arg3[%c0_3, %c0_4] : memref<32x128xf32, #tpu.memory_space<vmem>>, vector<32x128xf32>
    tpu.vector_store %arg3[%c0_3, %c0_4], %2 {strides = array<i32>} : memref<32x128xf32, #tpu.memory_space<vmem>>, vector<32x128xf32>,
    return
  }
  func.func @transform_0(%arg0: i32) -> (i32, i32) {
    %c0_i32 = arith.constant 0 : i32
    %c0_i32_0 = arith.constant 0 : i32
    return %arg0, %c0_i32 : i32, i32
  }
  func.func @transform_1(%arg0: i32) -> (i32, i32) {
    %c0_i32 = arith.constant 0 : i32
    %c0_i32_0 = arith.constant 0 : i32
    %c0_i32_1 = arith.constant 0 : i32
    return %c0_i32, %c0_i32_0 : i32, i32
  }
  func.func @transform_2(%arg0: i32) -> (i32, i32) {
    %c0_i32 = arith.constant 0 : i32
    %c0_i32_0 = arith.constant 0 : i32
    return %arg0, %c0_i32 : i32, i32
  }
}

</mosaic_0001>

<llo_original>
// kernel: tpu_custom_call.1
$region0: #{tpu_custom_call.1}
  #allocation0 [shape = 'u32[]', space=smem, size = 0x4, offset = 0x4, fixed_abs, tag = 'smem constant byte address 0x4 - core index']
  #allocation1 [shape = 'u32[72,128]{1,0:T(1,128)}', space=vmem, size = 0x9000, scoped, tag = 'internal scratch']
  %s0 = inlined_call_operand.hbm [shape: f32[32,128], index: 0, kind: input, shape index: {}]
  %s1 = inlined_call_operand.hbm [shape: f32[128,128], index: 1, kind: input, shape index: {}]
  %s2 = inlined_call_operand.hbm [shape: f32[32,128], index: 2, kind: output, shape index: {}]
  %s3 = sld [smem:[#allocation0]]
  $region26: #{tpu_custom_call.1} parent=0
    _
  %s5 = ssub.s32 1, %s3
  %s6 = scalar_select 0, %s5, %s3
  $region1: #{tpu_custom_call.1} parent=0
    #allocation2 [shape = 'u8[16384]{0}', space=vmem, size = 0x4000, scoped, tag = 'input window, operand 0, single buffered']
    #allocation3 [shape = 's32[1]{0}', space=sflag, size = 0x4, scoped, tag = 'scoped memory for tpu_custom_call.1']
    #allocation4 [shape = 's32[1]{0}', space=sflag, size = 0x4, scoped, tag = 'scoped memory for tpu_custom_call.1']
    #allocation5 [shape = 'u8[65536]{0}', space=vmem, size = 0x10000, scoped, tag = 'input window, operand 1, single buffered']
    #allocation6 [shape = 's32[1]{0}', space=sflag, size = 0x4, scoped, tag = 'scoped memory for tpu_custom_call.1']
    #allocation7 [shape = 'u8[16384]{0}', space=vmem, size = 0x4000, scoped, tag = 'output window, operand 0, single buffered']
    %7 = vsyncpa [#allocation3], 0
    %8 = vsyncpa [#allocation6], 0
    %9 = vsyncpa [#allocation4], 0
    // Predicated region
    $region2: #{tpu_custom_call.1} parent=1 // pred_check
      _
    $region3: #{tpu_custom_call.1} parent=1 // pred_check_branch
      %11 = sbr.rel (0) target = $region5
    $region4: #{tpu_custom_call.1} parent=1 // pred_region
      %13 = vsyncadd [#allocation3], 0
      %s14 = sshll.u32 %s0, 4
      %s15 = int_to_ptr.hbm [resolvable:$true] %s14
      %s16 = sshll.u32 [#allocation2], 4
      %s17 = int_to_ptr.vmem [resolvable:$true] %s16
      %22 = dma.hbm_to_vmem [thread:$0]  %s15, 512, %s17, [#allocation3], 128, 128, 8
    $region5: #{tpu_custom_call.1} parent=1 // pred_fallthru
      _
    // Predicated region
    $region6: #{tpu_custom_call.1} parent=1 // pred_check
      _
    $region7: #{tpu_custom_call.1} parent=1 // pred_check_branch
      %24 = sbr.rel (0) target = $region9
    $region8: #{tpu_custom_call.1} parent=1 // pred_region
      %26 = vsyncadd [#allocation6], 0
      %s27 = sshll.u32 %s1, 4
      %s28 = int_to_ptr.hbm [resolvable:$true] %s27
      %s29 = sshll.u32 [#allocation5], 4
      %s30 = int_to_ptr.vmem [resolvable:$true] %s29
      %35 = dma.hbm_to_vmem [thread:$0]  %s28, 2048, %s30, [#allocation6], 128, 128, 8
    $region9: #{tpu_custom_call.1} parent=1 // pred_fallthru
      _
    // Predicated region
    $region10: #{tpu_custom_call.1} parent=1 // pred_check
      _
    $region11: #{tpu_custom_call.1} parent=1 // pred_check_branch
      %37 = sbr.rel (0) target = $region13
    $region12: #{tpu_custom_call.1} parent=1 // pred_region
      %39 = dma.done [#allocation3], 512
    $region13: #{tpu_custom_call.1} parent=1 // pred_fallthru
      _
    // Predicated region
    $region14: #{tpu_custom_call.1} parent=1 // pred_check
      _
    $region15: #{tpu_custom_call.1} parent=1 // pred_check_branch
      %41 = sbr.rel (0) target = $region17
    $region16: #{tpu_custom_call.1} parent=1 // pred_region
      %43 = dma.done [#allocation6], 2048
    $region17: #{tpu_custom_call.1} parent=1 // pred_fallthru
      _
    %v44 = vld [vmem:[#allocation2] sm:$0xff]
    %v45 = vld [vmem:[#allocation2 + $0x8] sm:$0xff]
    %v46 = vld [vmem:[#allocation2 + $0x10] sm:$0xff]
    %v47 = vld [vmem:[#allocation2 + $0x18] sm:$0xff]
    %v48 = vld [vmem:[#allocation5] sm:$0xff]
    %v49 = vld [vmem:[#allocation5 + $0x8] sm:$0xff]
    %v50 = vld [vmem:[#allocation5 + $0x10] sm:$0xff]
    %v51 = vld [vmem:[#allocation5 + $0x18] sm:$0xff]
    %v52 = vld [vmem:[#allocation5 + $0x20] sm:$0xff]
    %v53 = vld [vmem:[#allocation5 + $0x28] sm:$0xff]
    %v54 = vld [vmem:[#allocation5 + $0x30] sm:$0xff]
    %v55 = vld [vmem:[#allocation5 + $0x38] sm:$0xff]
    %v56 = vld [vmem:[#allocation5 + $0x40] sm:$0xff]
    %v57 = vld [vmem:[#allocation5 + $0x48] sm:$0xff]
    %v58 = vld [vmem:[#allocation5 + $0x50] sm:$0xff]
    %v59 = vld [vmem:[#allocation5 + $0x58] sm:$0xff]
    %v60 = vld [vmem:[#allocation5 + $0x60] sm:$0xff]
    %v61 = vld [vmem:[#allocation5 + $0x68] sm:$0xff]
    %v62 = vld [vmem:[#allocation5 + $0x70] sm:$0xff]
    %v63 = vld [vmem:[#allocation5 + $0x78] sm:$0xff]
    %64 = vmatpush.msra.mxu0 %v63
    %65 = vmatpush.msra.mxu0 %v62
    %66 = vmatpush.msra.mxu0 %v61
    %67 = vmatpush.msra.mxu0 %v60
    %68 = vmatpush.msra.mxu0 %v59
    %69 = vmatpush.msra.mxu0 %v58
    %70 = vmatpush.msra.mxu0 %v57
    %71 = vmatpush.msra.mxu0 %v56
    %72 = vmatpush.msra.mxu0 %v55
    %73 = vmatpush.msra.mxu0 %v54
    %74 = vmatpush.msra.mxu0 %v53
    %75 = vmatpush.msra.mxu0 %v52
    %76 = vmatpush.msra.mxu0 %v51
    %77 = vmatpush.msra.mxu0 %v50
    %78 = vmatpush.msra.mxu0 %v49
    %79 = vmatpush.msra.mxu0 %v48
    %80 = vmatmul.f32.gmra.mxu0 %v44
    %v81 = vpop.f32.mrf.mxu0
    %v82 = vadd.f32 0.0, %v81
    %83 = vmatmul.f32.gmra.mxu0 %v45
    %v84 = vpop.f32.mrf.mxu0
    %v85 = vadd.f32 0.0, %v84
    %86 = vmatmul.f32.gmra.mxu0 %v46
    %v87 = vpop.f32.mrf.mxu0
    %v88 = vadd.f32 0.0, %v87
    %89 = vmatmul.f32.gmra.mxu0 %v47
    %v90 = vpop.f32.mrf.mxu0
    %v91 = vadd.f32 0.0, %v90
    %92 = vdwg.mxu0
    %93 = vst [vmem:[#allocation7] sm:$0xff] %v82
    %94 = vst [vmem:[#allocation7 + $0x8] sm:$0xff] %v85
    %95 = vst [vmem:[#allocation7 + $0x10] sm:$0xff] %v88
    %96 = vst [vmem:[#allocation7 + $0x18] sm:$0xff] %v91
    // Predicated region
    $region18: #{tpu_custom_call.1} parent=1 // pred_check
      _
    $region19: #{tpu_custom_call.1} parent=1 // pred_check_branch
      %98 = sbr.rel (0) target = $region21
    $region20: #{tpu_custom_call.1} parent=1 // pred_region
      %100 = vsyncadd [#allocation4], 0
      %s101 = sshll.u32 [#allocation7], 4
      %s102 = int_to_ptr.vmem [resolvable:$true] %s101
      %s103 = sshll.u32 %s2, 4
      %s104 = int_to_ptr.hbm [resolvable:$true] %s103
      %109 = dma.vmem_to_hbm [thread:$0]  %s102, 512, %s104, [#allocation4], 128, 128, 8
    $region21: #{tpu_custom_call.1} parent=1 // pred_fallthru
      _
    // Predicated region
    $region22: #{tpu_custom_call.1} parent=1 // pred_check
      _
    $region23: #{tpu_custom_call.1} parent=1 // pred_check_branch
      %111 = sbr.rel (0) target = $region25
    $region24: #{tpu_custom_call.1} parent=1 // pred_region
      %113 = dma.done [#allocation4], 512
    $region25: #{tpu_custom_call.1} parent=1 // pred_fallthru
      _
    %114 = vsyncpa [#allocation3], 1
    %115 = vsyncpa [#allocation6], 1
    %116 = vsyncpa [#allocation4], 1

</llo_original>
